<compile_context>
chip_gen: v7x
topology: tpu7x:2x2x1
jax: 0.10.0
libtpu: 0.0.40
codegen_flags: <defaults>
</compile_context>

<pallas_src>
import jax
import jax.numpy as jnp
from jax import lax
from jax.experimental import pallas as pl
from jax.experimental.pallas import tpu as pltpu

IN_FEATURES = 4
HIDDEN = 128
NUM_ACTIONS = 2


def policy_kernel(x_ref, w1_ref, b1_ref, wd_ref, bd_ref, outT_ref):
    # x: (TB, 4)   w1: (128, 4)   b1: (128, 1)   wd: (1, 128)   bd: (1, 1)
    # outT: (2, TB)

    # --- affine1 on the MXU: (128,4) . (TB,4)^T -> (128, TB); absorbs the transpose ---
    h = lax.dot_general(
        w1_ref[...], x_ref[...],
        dimension_numbers=(((1,), (1,)), ((), ())),
        preferred_element_type=jnp.float32,
    ) + b1_ref[...]

    # --- dropout (eval mode -> identity), then ReLU ---
    h = jnp.maximum(h, 0.0)

    # --- affine2 + 2-class softmax == sigmoid of the logit difference (MXU) ---
    #   softmax([s0, s1]) = [sigmoid(s0 - s1), sigmoid(s1 - s0)]
    d = jnp.dot(wd_ref[...], h, preferred_element_type=jnp.float32) + bd_ref[...]  # (1, TB)
    p0 = jax.nn.sigmoid(d)
    p1 = jax.nn.sigmoid(-d)   # exact softmax[1]; p0 + p1 == 1 to within ulp

    # Single lane-dense store of both output rows.
    outT_ref[...] = jnp.concatenate([p0, p1], axis=0)


def policy_forward(x, w1, b1, w2, b2, *, tb=1024):
    """x: (B, 4) f32 -> (B, 2) f32 softmax probabilities."""
    B = x.shape[0]

    # Clamp the tile so there are at least 2 grid steps (v7x megacore sharding)
    # but never below the 128-lane width.  VMEM footprint at tb=2048 is still
    # ~1.1 MiB/tile, far under every generation's limit, so no vmem override.
    tb = max(128, min(tb, pl.cdiv(pl.cdiv(B, 2), 128) * 128))
    n_tiles = pl.cdiv(B, tb)

    # Host-precomputed logit-difference params (tiny one-time op).
    wd = (w2[:, 0] - w2[:, 1]).reshape(1, HIDDEN)
    bd = (b2[:, 0] - b2[:, 1]).reshape(1, 1)

    cost = pl.CostEstimate(
        flops=2 * B * (IN_FEATURES * HIDDEN + HIDDEN),
        transcendentals=2 * B,
        bytes_accessed=4 * (x.size + NUM_ACTIONS * B
                            + w1.size + b1.size + wd.size + bd.size),
    )

    outT = pl.pallas_call(
        policy_kernel,
        out_shape=jax.ShapeDtypeStruct((NUM_ACTIONS, B), jnp.float32),
        grid=(n_tiles,),
        in_specs=[
            pl.BlockSpec((tb, IN_FEATURES), lambda i: (i, 0)),       # x tile (batch-major)
            pl.BlockSpec((HIDDEN, IN_FEATURES), lambda i: (0, 0)),   # w1 (resident)
            pl.BlockSpec((HIDDEN, 1), lambda i: (0, 0)),             # b1 (resident)
            pl.BlockSpec((1, HIDDEN), lambda i: (0, 0)),             # wd (resident)
            pl.BlockSpec((1, 1), lambda i: (0, 0)),                  # bd (resident)
        ],
        out_specs=pl.BlockSpec((NUM_ACTIONS, tb), lambda i: (0, i)),
        compiler_params=pltpu.CompilerParams(
            dimension_semantics=("parallel",),   # shard batch tiles across TCs (v7x)
        ),
        cost_estimate=cost,
    )(x, w1, b1, wd, bd)

    return outT.T


def init_params(key):
    """PyTorch nn.Linear default init: U[-1/sqrt(fan_in), 1/sqrt(fan_in)]."""
    k1, k2, k3, k4 = jax.random.split(key, 4)
    bound1 = 1.0 / jnp.sqrt(jnp.float32(IN_FEATURES))
    bound2 = 1.0 / jnp.sqrt(jnp.float32(HIDDEN))
    w1 = jax.random.uniform(k1, (HIDDEN, IN_FEATURES), jnp.float32, -bound1, bound1)
    b1 = jax.random.uniform(k2, (HIDDEN, 1), jnp.float32, -bound1, bound1)
    w2 = jax.random.uniform(k3, (HIDDEN, NUM_ACTIONS), jnp.float32, -bound2, bound2)
    b2 = jax.random.uniform(k4, (1, NUM_ACTIONS), jnp.float32, -bound2, bound2)
    return w1, b1, w2, b2


def reference_forward(x, w1, b1, w2, b2):
    h = jnp.maximum(x @ w1.T + b1.T, 0.0)     # (B, 128)
    s = h @ w2 + b2                            # (B, 2)
    return jax.nn.softmax(s, axis=1)


if __name__ == "__main__":
    key = jax.random.PRNGKey(0)
    kx, kp = jax.random.split(key)

    # Non-multiple of the 128-row tile: exercises the partial edge block and a
    # 2-step grid (tb is clamped to 128 here so both tiles get work).
    batch = 200
    x = jax.random.normal(kx, (batch, IN_FEATURES), jnp.float32)
    w1, b1, w2, b2 = init_params(kp)

    out = jax.block_until_ready(policy_forward(x, w1, b1, w2, b2))
    ref = reference_forward(x, w1, b1, w2, b2)

    assert out.shape == (batch, NUM_ACTIONS)
    assert bool(jnp.all(jnp.isfinite(out))), "non-finite output"
    assert jnp.allclose(out, ref, atol=1e-5, rtol=1e-5), "mismatch vs. reference"
    assert jnp.allclose(jnp.sum(out, axis=1), 1.0, atol=1e-5), "softmax rows must sum to 1"

    print("KERNEL_OK")
</pallas_src>

<mosaic_0001>
module attributes {stable_mosaic.version = 11 : i64} {
  func.func @policy_kernel(%arg0: i32, %arg1: memref<128x4xf32, #tpu.memory_space<vmem>>, %arg2: memref<128x4xf32, #tpu.memory_space<vmem>>, %arg3: memref<128x1xf32, #tpu.memory_space<vmem>>, %arg4: memref<1x128xf32, #tpu.memory_space<vmem>>, %arg5: memref<1x1xf32, #tpu.memory_space<vmem>>, %arg6: memref<2x128xf32, #tpu.memory_space<vmem>>) attributes {dimension_semantics = [#tpu.dimension_semantics<parallel>], iteration_bounds = array<i64: 2>, scalar_prefetch = 0 : i64, scratch_operands = 0 : i64, tpu.core_type = #tpu.core_type<tc>, window_params = [{transform_indices = @transform_0, window_bounds = array<i64: 128, 4>}, {pipeline_mode = #tpu.pipeline_mode<synchronous>, transform_indices = @transform_1, window_bounds = array<i64: 128, 4>}, {pipeline_mode = #tpu.pipeline_mode<synchronous>, transform_indices = @transform_2, window_bounds = array<i64: 128, 1>}, {pipeline_mode = #tpu.pipeline_mode<synchronous>, transform_indices = @transform_3, window_bounds = array<i64: 1, 128>}, {pipeline_mode = #tpu.pipeline_mode<synchronous>, transform_indices = @transform_4, window_bounds = array<i64: 1, 1>}, {transform_indices = @transform_5, window_bounds = array<i64: 2, 128>}]} {
    %c0 = arith.constant 0 : index
    %c0_0 = arith.constant 0 : index
    %0 = vector.load %arg2[%c0, %c0_0] : memref<128x4xf32, #tpu.memory_space<vmem>>, vector<128x4xf32>
    %c0_1 = arith.constant 0 : index
    %c0_2 = arith.constant 0 : index
    %1 = vector.load %arg1[%c0_1, %c0_2] : memref<128x4xf32, #tpu.memory_space<vmem>>, vector<128x4xf32>
    %cst = arith.constant dense<0.000000e+00> : vector<128x128xf32>
    %2 = tpu.matmul %0, %1, %cst {dimension_numbers = #tpu.dot_dimension_numbers<[1], [1], [0], [0], [0, 0, 1, 0], [], []>} : vector<128x4xf32>, vector<128x4xf32>, vector<128x128xf32> -> vector<128x128xf32>
    %c0_3 = arith.constant 0 : index
    %c0_4 = arith.constant 0 : index
    %3 = vector.load %arg3[%c0_3, %c0_4] : memref<128x1xf32, #tpu.memory_space<vmem>>, vector<128x1xf32>
    %4 = vector.broadcast %3 : vector<128x1xf32> to vector<128x128xf32>
    %5 = arith.addf %2, %4 : vector<128x128xf32>
    %cst_5 = arith.constant 0.000000e+00 : f32
    %6 = vector.broadcast %cst_5 : f32 to vector<128x128xf32>
    %7 = arith.maximumf %5, %6 : vector<128x128xf32>
    %c0_6 = arith.constant 0 : index
    %c0_7 = arith.constant 0 : index
    %8 = vector.load %arg4[%c0_6, %c0_7] : memref<1x128xf32, #tpu.memory_space<vmem>>, vector<1x128xf32>
    %cst_8 = arith.constant dense<0.000000e+00> : vector<1x128xf32>
    %9 = tpu.matmul %8, %7, %cst_8 {dimension_numbers = #tpu.dot_dimension_numbers<[1], [0], [0], [1], [0, 0, 1, 1], [], []>} : vector<1x128xf32>, vector<128x128xf32>, vector<1x128xf32> -> vector<1x128xf32>
    %c0_9 = arith.constant 0 : index
    %c0_10 = arith.constant 0 : index
    %10 = vector.load %arg5[%c0_9, %c0_10] : memref<1x1xf32, #tpu.memory_space<vmem>>, vector<1x1xf32>
    %11 = vector.broadcast %10 : vector<1x1xf32> to vector<1x128xf32>
    %12 = arith.addf %9, %11 : vector<1x128xf32>
    %13 = arith.negf %12 : vector<1x128xf32>
    %14 = math.exp %13 : vector<1x128xf32>
    %cst_11 = arith.constant 1.000000e+00 : f32
    %15 = vector.broadcast %cst_11 : f32 to vector<1x128xf32>
    %16 = arith.addf %15, %14 : vector<1x128xf32>
    %17 = arith.divf %15, %16 : vector<1x128xf32>
    %cst_12 = arith.constant 0.000000e+00 : f32
    %18 = vector.broadcast %cst_12 : f32 to vector<1x128xf32>
    %19 = arith.subf %18, %12 : vector<1x128xf32>
    %20 = arith.negf %19 : vector<1x128xf32>
    %21 = math.exp %20 : vector<1x128xf32>
    %cst_13 = arith.constant 1.000000e+00 : f32
    %22 = vector.broadcast %cst_13 : f32 to vector<1x128xf32>
    %23 = arith.addf %22, %21 : vector<1x128xf32>
    %24 = arith.divf %22, %23 : vector<1x128xf32>
    %25 = tpu.concatenate %17, %24 in 0 : vector<1x128xf32>, vector<1x128xf32> -> vector<2x128xf32>
    %c0_14 = arith.constant 0 : index
    %c0_15 = arith.constant 0 : index
    %26 = vector.load %arg6[%c0_14, %c0_15] : memref<2x128xf32, #tpu.memory_space<vmem>>, vector<2x128xf32>
    tpu.vector_store %arg6[%c0_14, %c0_15], %25 {strides = array<i32>} : memref<2x128xf32, #tpu.memory_space<vmem>>, vector<2x128xf32>,
    return
  }
  func.func @transform_0(%arg0: i32) -> (i32, i32) {
    %c0_i32 = arith.constant 0 : i32
    %c0_i32_0 = arith.constant 0 : i32
    return %arg0, %c0_i32 : i32, i32
  }
  func.func @transform_1(%arg0: i32) -> (i32, i32) {
    %c0_i32 = arith.constant 0 : i32
    %c0_i32_0 = arith.constant 0 : i32
    %c0_i32_1 = arith.constant 0 : i32
    return %c0_i32, %c0_i32_0 : i32, i32
  }
  func.func @transform_2(%arg0: i32) -> (i32, i32) {
    %c0_i32 = arith.constant 0 : i32
    %c0_i32_0 = arith.constant 0 : i32
    %c0_i32_1 = arith.constant 0 : i32
    return %c0_i32, %c0_i32_0 : i32, i32
  }
  func.func @transform_3(%arg0: i32) -> (i32, i32) {
    %c0_i32 = arith.constant 0 : i32
    %c0_i32_0 = arith.constant 0 : i32
    %c0_i32_1 = arith.constant 0 : i32
    return %c0_i32, %c0_i32_0 : i32, i32
  }
  func.func @transform_4(%arg0: i32) -> (i32, i32) {
    %c0_i32 = arith.constant 0 : i32
    %c0_i32_0 = arith.constant 0 : i32
    %c0_i32_1 = arith.constant 0 : i32
    return %c0_i32, %c0_i32_0 : i32, i32
  }
  func.func @transform_5(%arg0: i32) -> (i32, i32) {
    %c0_i32 = arith.constant 0 : i32
    %c0_i32_0 = arith.constant 0 : i32
    return %c0_i32, %arg0 : i32, i32
  }
}

</mosaic_0001>

<llo_original>
// kernel: tpu_custom_call.1
$region0: #{tpu_custom_call.1}
  #allocation0 [shape = 'u32[]', space=smem, size = 0x4, offset = 0x4, fixed_abs, tag = 'smem constant byte address 0x4 - core index']
  #allocation1 [shape = 'u32[144,128]{1,0:T(1,128)}', space=vmem, size = 0x12000, scoped, tag = 'internal scratch']
  #allocation2 [shape = 'f32[1,1]{1,0:T(1,128)S(1)}', space=vmem, size = 0x200, scoped, tag = 'scoped memory for tpu_custom_call.1']
  %s0 = inlined_call_operand.vmem [shape: f32[200,4], index: 0, kind: input, shape index: {}]
  %s1 = inlined_call_operand.vmem [shape: f32[128,4], index: 1, kind: input, shape index: {}]
  %s2 = inlined_call_operand.vmem [shape: f32[128,1], index: 2, kind: input, shape index: {}]
  %s3 = inlined_call_operand.vmem [shape: f32[1,128], index: 3, kind: input, shape index: {}]
  %s4 = inlined_call_operand.<no memory space> [shape: f32[1,1], index: 4, kind: input, shape index: {}]
  %s5 = inlined_call_operand.hbm [shape: f32[2,200], index: 5, kind: output, shape index: {}]
  %s6 = sld [smem:[#allocation0]]
  $region53: #{tpu_custom_call.1} parent=0
    _
  %s8 = ssub.s32 1, %s6
  %s9 = scalar_select 0, %s8, %s6
  %v10 = vstv %s4
  %11 = vst [vmem:[#allocation2] sm:$0x1] %v10
  $region1: #{tpu_custom_call.1} parent=0
    #allocation3 [shape = 'u8[2048]{0}', space=vmem, size = 0x800, scoped, tag = 'output window, operand 0']
    #allocation4 [shape = 's32[2]{0}', space=sflag, size = 0x8, scoped, tag = 'scoped memory for tpu_custom_call.1']
    %12 = vsyncpa [#allocation4], 0
    %s13 = scalar_lea.sflag [#allocation4], 1
    %14 = vsyncpa %s13, 0
    loop: start=0, step=1, limit=4
    $region2: #{tpu_custom_call.1} parent=1 // loop_pre_header
      _
    $region3: #{tpu_custom_call.1} parent=1 // loop_header
      %s16 = sphi 0, %s20
      %p17 = scmp.ge.s32.totalorder %s16, 4
      %s26 = sphi 0, %s28
      %s29 = sphi 0, %s26
      %s30 = sphi 0, %s29
      %s46 = sphi 0, %s30
      %s50 = sphi 0, %s50
      %s52 = sphi 0, %s50
      %s53 = sphi 0, %s52
      %s67 = sphi 0, %s53
      %s71 = sphi 0, %s71
      %s73 = sphi 0, %s71
      %s74 = sphi 0, %s73
      %s88 = sphi 0, %s74
      %s92 = sphi 0, %s92
      %s94 = sphi 0, %s92
      %s95 = sphi 0, %s94
      %s109 = sphi 0, %s95
      %s113 = sphi 0, %s113
      %s115 = sphi 0, %s113
      %s116 = sphi 0, %s115
      %s130 = sphi 0, %s116
      %s136 = sphi 0, %s138
      %s139 = sphi 0, %s136
      %s140 = sphi 0, %s139
      %s156 = sphi 0, %s140
    $region4: #{tpu_custom_call.1} parent=1 // loop_header_branch
      %19 = sbr.rel (%p17) target = $region8
    $region5: #{tpu_custom_call.1} parent=1 // loop_body
      %s21 = ssub.s32 %s16, 1
      %s22 = ssub.s32 %s16, 2
      %s23 = sadd.s32 %s16, 1
      %s24 = ssub.s32 %s16, %s23
      %p25 = scmp.eq.s32.totalorder %s24, 0
      %s27 = sadd.s32 %s26, 1
      %s28 = scalar_select %p25, %s26, %s27
      %p31 = pneg %p25
      %p32 = scmp.eq.s32.totalorder %s16, 1
      %p33 = por %p31, %p32
      %p34 = scmp.ne.s32.totalorder %s26, %s29
      %p35 = scmp.eq.s32.totalorder %s16, 0
      %p36 = por %p34, %p35
      %p37 = scmp.ne.s32.totalorder %s26, %s29
      %p38 = scmp.eq.s32.totalorder %s21, 1
      %p39 = por %p37, %p38
      %p40 = scmp.ne.s32.totalorder %s29, %s30
      %p41 = scmp.eq.s32.totalorder %s21, 0
      %p42 = por %p40, %p41
      %p43 = scmp.ne.s32.totalorder %s29, %s30
      %p44 = scmp.eq.s32.totalorder %s22, 1
      %p45 = por %p43, %p44
      %p47 = scmp.ne.s32.totalorder %s30, %s46
      %p48 = scmp.eq.s32.totalorder %s22, 0
      %p49 = por %p47, %p48
      %s51 = sadd.s32 %s50, 1
      %p54 = scmp.eq.s32.totalorder %s16, 1
      %p55 = scmp.ne.s32.totalorder %s50, %s52
      %p56 = scmp.eq.s32.totalorder %s16, 0
      %p57 = por %p55, %p56
      %p58 = scmp.ne.s32.totalorder %s50, %s52
      %p59 = scmp.eq.s32.totalorder %s21, 1
      %p60 = por %p58, %p59
      %p61 = scmp.ne.s32.totalorder %s52, %s53
      %p62 = scmp.eq.s32.totalorder %s21, 0
      %p63 = por %p61, %p62
      %p64 = scmp.ne.s32.totalorder %s52, %s53
      %p65 = scmp.eq.s32.totalorder %s22, 1
      %p66 = por %p64, %p65
      %p68 = scmp.ne.s32.totalorder %s53, %s67
      %p69 = scmp.eq.s32.totalorder %s22, 0
      %p70 = por %p68, %p69
      %s72 = sadd.s32 %s71, 1
      %p75 = scmp.eq.s32.totalorder %s16, 1
      %p76 = scmp.ne.s32.totalorder %s71, %s73
      %p77 = scmp.eq.s32.totalorder %s16, 0
      %p78 = por %p76, %p77
      %p79 = scmp.ne.s32.totalorder %s71, %s73
      %p80 = scmp.eq.s32.totalorder %s21, 1
      %p81 = por %p79, %p80
      %p82 = scmp.ne.s32.totalorder %s73, %s74
      %p83 = scmp.eq.s32.totalorder %s21, 0
      %p84 = por %p82, %p83
      %p85 = scmp.ne.s32.totalorder %s73, %s74
      %p86 = scmp.eq.s32.totalorder %s22, 1
      %p87 = por %p85, %p86
      %p89 = scmp.ne.s32.totalorder %s74, %s88
      %p90 = scmp.eq.s32.totalorder %s22, 0
      %p91 = por %p89, %p90
      %s93 = sadd.s32 %s92, 1
      %p96 = scmp.eq.s32.totalorder %s16, 1
      %p97 = scmp.ne.s32.totalorder %s92, %s94
      %p98 = scmp.eq.s32.totalorder %s16, 0
      %p99 = por %p97, %p98
      %p100 = scmp.ne.s32.totalorder %s92, %s94
      %p101 = scmp.eq.s32.totalorder %s21, 1
      %p102 = por %p100, %p101
      %p103 = scmp.ne.s32.totalorder %s94, %s95
      %p104 = scmp.eq.s32.totalorder %s21, 0
      %p105 = por %p103, %p104
      %p106 = scmp.ne.s32.totalorder %s94, %s95
      %p107 = scmp.eq.s32.totalorder %s22, 1
      %p108 = por %p106, %p107
      %p110 = scmp.ne.s32.totalorder %s95, %s109
      %p111 = scmp.eq.s32.totalorder %s22, 0
      %p112 = por %p110, %p111
      %s114 = sadd.s32 %s113, 1
      %p117 = scmp.eq.s32.totalorder %s16, 1
      %p118 = scmp.ne.s32.totalorder %s113, %s115
      %p119 = scmp.eq.s32.totalorder %s16, 0
      %p120 = por %p118, %p119
      %p121 = scmp.ne.s32.totalorder %s113, %s115
      %p122 = scmp.eq.s32.totalorder %s21, 1
      %p123 = por %p121, %p122
      %p124 = scmp.ne.s32.totalorder %s115, %s116
      %p125 = scmp.eq.s32.totalorder %s21, 0
      %p126 = por %p124, %p125
      %p127 = scmp.ne.s32.totalorder %s115, %s116
      %p128 = scmp.eq.s32.totalorder %s22, 1
      %p129 = por %p127, %p128
      %p131 = scmp.ne.s32.totalorder %s116, %s130
      %p132 = scmp.eq.s32.totalorder %s22, 0
      %p133 = por %p131, %p132
      %s134 = ssub.s32 %s16, %s23
      %p135 = scmp.eq.s32.totalorder %s134, 0
      %s137 = sadd.s32 %s136, 1
      %s138 = scalar_select %p135, %s136, %s137
      %p141 = pneg %p135
      %p142 = scmp.eq.s32.totalorder %s16, 1
      %p143 = por %p141, %p142
      %p144 = scmp.ne.s32.totalorder %s136, %s139
      %p145 = scmp.eq.s32.totalorder %s16, 0
      %p146 = por %p144, %p145
      %p147 = scmp.ne.s32.totalorder %s136, %s139
      %p148 = scmp.eq.s32.totalorder %s21, 1
      %p149 = por %p147, %p148
      %p150 = scmp.ne.s32.totalorder %s139, %s140
      %p151 = scmp.eq.s32.totalorder %s21, 0
      %p152 = por %p150, %p151
      %p153 = scmp.ne.s32.totalorder %s139, %s140
      %p154 = scmp.eq.s32.totalorder %s22, 1
      %p155 = por %p153, %p154
      %p157 = scmp.ne.s32.totalorder %s140, %s156
      %p158 = scmp.eq.s32.totalorder %s22, 0
      %p159 = por %p157, %p158
      %p160 = scmp.le.s32.totalorder 1, %s16
      %p161 = scmp.lt.s32.totalorder %s16, 3
      %p162 = pnand %p160, %p161
      %p163 = pneg %p162
      // Predicated region
      $region9: #{tpu_custom_call.1} parent=5 // pred_check
        _
      $region10: #{tpu_custom_call.1} parent=5 // pred_check_branch
        %165 = sbr.rel (%p162) target = $region12
      $region11: #{tpu_custom_call.1} parent=5 // pred_region
        %s166 = ssub.s32 %s16, 1
        // Predicated region
        $region13: #{tpu_custom_call.1} parent=11 // pred_check
          %p167 = pneg %p63
        $region14: #{tpu_custom_call.1} parent=11 // pred_check_branch
          %169 = sbr.rel (%p167) target = $region16
        $region15: #{tpu_custom_call.1} parent=11 // pred_region
          _
        $region16: #{tpu_custom_call.1} parent=11 // pred_fallthru
          _
        // Predicated region
        $region17: #{tpu_custom_call.1} parent=11 // pred_check
          %p170 = pneg %p84
        $region18: #{tpu_custom_call.1} parent=11 // pred_check_branch
          %172 = sbr.rel (%p170) target = $region20
        $region19: #{tpu_custom_call.1} parent=11 // pred_region
          _
        $region20: #{tpu_custom_call.1} parent=11 // pred_fallthru
          _
        // Predicated region
        $region21: #{tpu_custom_call.1} parent=11 // pred_check
          %p173 = pneg %p105
        $region22: #{tpu_custom_call.1} parent=11 // pred_check_branch
          %175 = sbr.rel (%p173) target = $region24
        $region23: #{tpu_custom_call.1} parent=11 // pred_region
          _
        $region24: #{tpu_custom_call.1} parent=11 // pred_fallthru
          _
        // Predicated region
        $region25: #{tpu_custom_call.1} parent=11 // pred_check
          %p176 = pneg %p126
        $region26: #{tpu_custom_call.1} parent=11 // pred_check_branch
          %178 = sbr.rel (%p176) target = $region28
        $region27: #{tpu_custom_call.1} parent=11 // pred_region
          _
        $region28: #{tpu_custom_call.1} parent=11 // pred_fallthru
          _
      $region12: #{tpu_custom_call.1} parent=5 // pred_fallthru
        _
      %p179 = scmp.lt.s32.totalorder %s16, 2
      // Predicated region
      $region29: #{tpu_custom_call.1} parent=5 // pred_check
        %p180 = pneg %p179
      $region30: #{tpu_custom_call.1} parent=5 // pred_check_branch
        %182 = sbr.rel (%p180) target = $region32
      $region31: #{tpu_custom_call.1} parent=5 // pred_region
        // Predicated region
        $region33: #{tpu_custom_call.1} parent=31 // pred_check
          %p183 = pneg %p36
        $region34: #{tpu_custom_call.1} parent=31 // pred_check_branch
          %185 = sbr.rel (%p183) target = $region36
        $region35: #{tpu_custom_call.1} parent=31 // pred_region
          %s186 = smul.u32 16, %s16
          %s187 = ssub.s32 25, %s186
          %p188 = scmp.lt.s32.totalorder %s187, 16
          %s189 = scalar_select %p188, %s187, 16
          %s190 = smul.u32 128, %s189
          %p191 = scmp.lt.s32.totalorder %s186, 24
          %s192 = scalar_select %p191, %s186, 24
          %s193 = smul.addr %s192, 8
          %s194 = scalar_lea.vmem %s0, %s193
          %s195 = smul.u32 16, %s16
          %s196 = ssub.s32 25, %s195
          %p197 = scmp.lt.s32.totalorder %s196, 16
          %s198 = scalar_select %p197, %s196, 16
          %s199 = smul.u32 128, %s198
        $region36: #{tpu_custom_call.1} parent=31 // pred_fallthru
          _
      $region32: #{tpu_custom_call.1} parent=5 // pred_fallthru
        _
      %p200 = scmp.le.s32.totalorder 1, %s16
      %p201 = scmp.lt.s32.totalorder %s16, 3
      %p202 = pnand %p200, %p201
      %p203 = pneg %p202
      // Predicated region
      $region37: #{tpu_custom_call.1} parent=5 // pred_check
        _
      $region38: #{tpu_custom_call.1} parent=5 // pred_check_branch
        %205 = sbr.rel (%p202) target = $region40
      $region39: #{tpu_custom_call.1} parent=5 // pred_region
        %s206 = ssub.s32 %s16, 1
        %s207 = smul.u32 16, %s21
        %s208 = ssub.s32 25, %s207
        %p209 = scmp.lt.s32.totalorder %s208, 16
        %s210 = scalar_select %p209, %s208, 16
        %s211 = smul.u32 128, %s210
        %p212 = scmp.lt.s32.totalorder %s207, 24
        %s213 = scalar_select %p212, %s207, 24
        %s214 = smul.addr %s213, 8
        %s215 = scalar_lea.vmem %s0, %s214
        %p216 = pneg %p42
        %p217 = pneg %p39
        %p218 = pneg %p63
        %p219 = pneg %p60
        %p220 = pneg %p84
        %p221 = pneg %p81
        %p222 = pneg %p105
        %p223 = pneg %p102
        %p224 = pneg %p126
        %p225 = pneg %p123
        %p226 = pneg %p152
        %p227 = pneg %p149
        %s228 = sand.u32 %s139, 1
        %s229 = scalar_lea.sflag [#allocation4], %s228
        %s230 = sand.u32 %s139, 1
        %s231 = smul.addr %s230, 2
        %s232 = scalar_lea.vmem [#allocation3], %s231
        %s233 = smul.u32 16, %s21
        %s234 = ssub.s32 25, %s233
        %p235 = scmp.lt.s32.totalorder %s234, 16
        %s236 = scalar_select %p235, %s234, 16
        %s237 = smul.u32 128, %s236
        %p238 = scmp.lt.s32.totalorder %s233, 24
        %s239 = scalar_select %p238, %s233, 24
        %s240 = smul.addr %s239, 8
        %s241 = scalar_lea.vmem %s0, %s240
        %s242 = smul.u32 16, %s21
        %s243 = ssub.s32 25, %s242
        %p244 = scmp.lt.s32.totalorder %s243, 16
        %s245 = scalar_select %p244, %s243, 16
        %s246 = smul.u32 128, %s245
        %v247 = vld [vmem:[%s1] sm:$0xff]
        %v248 = vld [vmem:[%s1 + $0x8] sm:$0xff]
        %v249 = vld [vmem:[%s1 + $0x10] sm:$0xff]
        %v250 = vld [vmem:[%s1 + $0x18] sm:$0xff]
        %v251 = vld [vmem:[%s1 + $0x20] sm:$0xff]
        %v252 = vld [vmem:[%s1 + $0x28] sm:$0xff]
        %v253 = vld [vmem:[%s1 + $0x30] sm:$0xff]
        %v254 = vld [vmem:[%s1 + $0x38] sm:$0xff]
        %v255 = vld [vmem:[%s1 + $0x40] sm:$0xff]
        %v256 = vld [vmem:[%s1 + $0x48] sm:$0xff]
        %v257 = vld [vmem:[%s1 + $0x50] sm:$0xff]
        %v258 = vld [vmem:[%s1 + $0x58] sm:$0xff]
        %v259 = vld [vmem:[%s1 + $0x60] sm:$0xff]
        %v260 = vld [vmem:[%s1 + $0x68] sm:$0xff]
        %v261 = vld [vmem:[%s1 + $0x70] sm:$0xff]
        %v262 = vld [vmem:[%s1 + $0x78] sm:$0xff]
        %v263 = vld [vmem:[%s241] sm:$0xff]
        %v264 = vld [vmem:[%s241 + $0x8] sm:$0xff]
        %v265 = vld [vmem:[%s241 + $0x10] sm:$0xff]
        %v266 = vld [vmem:[%s241 + $0x18] sm:$0xff]
        %v267 = vld [vmem:[%s241 + $0x20] sm:$0xff]
        %v268 = vld [vmem:[%s241 + $0x28] sm:$0xff]
        %v269 = vld [vmem:[%s241 + $0x30] sm:$0xff]
        %v270 = vld [vmem:[%s241 + $0x38] sm:$0xff]
        %v271 = vld [vmem:[%s241 + $0x40] sm:$0xff]
        %v272 = vld [vmem:[%s241 + $0x48] sm:$0xff]
        %v273 = vld [vmem:[%s241 + $0x50] sm:$0xff]
        %v274 = vld [vmem:[%s241 + $0x58] sm:$0xff]
        %v275 = vld [vmem:[%s241 + $0x60] sm:$0xff]
        %v276 = vld [vmem:[%s241 + $0x68] sm:$0xff]
        %v277 = vld [vmem:[%s241 + $0x70] sm:$0xff]
        %v278 = vld [vmem:[%s241 + $0x78] sm:$0xff]
        %v279 = vld [vmem:[%s2] sm:$0xff]
        %v280 = vld [vmem:[%s2 + $0x8] sm:$0xff]
        %v281 = vld [vmem:[%s2 + $0x10] sm:$0xff]
        %v282 = vld [vmem:[%s2 + $0x18] sm:$0xff]
        %v283 = vld [vmem:[%s2 + $0x20] sm:$0xff]
        %v284 = vld [vmem:[%s2 + $0x28] sm:$0xff]
        %v285 = vld [vmem:[%s2 + $0x30] sm:$0xff]
        %v286 = vld [vmem:[%s2 + $0x38] sm:$0xff]
        %v287 = vld [vmem:[%s2 + $0x40] sm:$0xff]
        %v288 = vld [vmem:[%s2 + $0x48] sm:$0xff]
        %v289 = vld [vmem:[%s2 + $0x50] sm:$0xff]
        %v290 = vld [vmem:[%s2 + $0x58] sm:$0xff]
        %v291 = vld [vmem:[%s2 + $0x60] sm:$0xff]
        %v292 = vld [vmem:[%s2 + $0x68] sm:$0xff]
        %v293 = vld [vmem:[%s2 + $0x70] sm:$0xff]
        %v294 = vld [vmem:[%s2 + $0x78] sm:$0xff]
        %296 = vset.pattern.permute.xlu0 0
        %297 = vperm.xlu0 %296, %v279
        %v298 = vpop.permute.xlu0 %297
        %301 = vset.pattern.permute.xlu0 0
        %302 = vperm.xlu0 %301, %v280
        %v303 = vpop.permute.xlu0 %302
        %306 = vset.pattern.permute.xlu0 0
        %307 = vperm.xlu0 %306, %v281
        %v308 = vpop.permute.xlu0 %307
        %311 = vset.pattern.permute.xlu0 0
        %312 = vperm.xlu0 %311, %v282
        %v313 = vpop.permute.xlu0 %312
        %316 = vset.pattern.permute.xlu0 0
        %317 = vperm.xlu0 %316, %v283
        %v318 = vpop.permute.xlu0 %317
        %321 = vset.pattern.permute.xlu0 0
        %322 = vperm.xlu0 %321, %v284
        %v323 = vpop.permute.xlu0 %322
        %326 = vset.pattern.permute.xlu0 0
        %327 = vperm.xlu0 %326, %v285
        %v328 = vpop.permute.xlu0 %327
        %331 = vset.pattern.permute.xlu0 0
        %332 = vperm.xlu0 %331, %v286
        %v333 = vpop.permute.xlu0 %332
        %336 = vset.pattern.permute.xlu0 0
        %337 = vperm.xlu0 %336, %v287
        %v338 = vpop.permute.xlu0 %337
        %341 = vset.pattern.permute.xlu0 0
        %342 = vperm.xlu0 %341, %v288
        %v343 = vpop.permute.xlu0 %342
        %346 = vset.pattern.permute.xlu0 0
        %347 = vperm.xlu0 %346, %v289
        %v348 = vpop.permute.xlu0 %347
        %351 = vset.pattern.permute.xlu0 0
        %352 = vperm.xlu0 %351, %v290
        %v353 = vpop.permute.xlu0 %352
        %356 = vset.pattern.permute.xlu0 0
        %357 = vperm.xlu0 %356, %v291
        %v358 = vpop.permute.xlu0 %357
        %361 = vset.pattern.permute.xlu0 0
        %362 = vperm.xlu0 %361, %v292
        %v363 = vpop.permute.xlu0 %362
        %366 = vset.pattern.permute.xlu0 0
        %367 = vperm.xlu0 %366, %v293
        %v368 = vpop.permute.xlu0 %367
        %371 = vset.pattern.permute.xlu0 0
        %372 = vperm.xlu0 %371, %v294
        %v373 = vpop.permute.xlu0 %372
        %vm375 = vcmask 31744
        %v377 = vsel %vm375, %v247, 0
        %v380 = vsel %vm375, %v248, 0
        %v383 = vsel %vm375, %v249, 0
        %v386 = vsel %vm375, %v250, 0
        %v389 = vsel %vm375, %v251, 0
        %v392 = vsel %vm375, %v252, 0
        %v395 = vsel %vm375, %v253, 0
        %v398 = vsel %vm375, %v254, 0
        %v401 = vsel %vm375, %v255, 0
        %v404 = vsel %vm375, %v256, 0
        %v407 = vsel %vm375, %v257, 0
        %v410 = vsel %vm375, %v258, 0
        %v413 = vsel %vm375, %v259, 0
        %v416 = vsel %vm375, %v260, 0
        %v419 = vsel %vm375, %v261, 0
        %v422 = vsel %vm375, %v262, 0
        %v425 = vsel %vm375, %v263, 0
        %v428 = vsel %vm375, %v264, 0
        %v431 = vsel %vm375, %v265, 0
        %v434 = vsel %vm375, %v266, 0
        %v437 = vsel %vm375, %v267, 0
        %v440 = vsel %vm375, %v268, 0
        %v443 = vsel %vm375, %v269, 0
        %v446 = vsel %vm375, %v270, 0
        %v449 = vsel %vm375, %v271, 0
        %v452 = vsel %vm375, %v272, 0
        %v455 = vsel %vm375, %v273, 0
        %v458 = vsel %vm375, %v274, 0
        %v461 = vsel %vm375, %v275, 0
        %v464 = vsel %vm375, %v276, 0
        %v467 = vsel %vm375, %v277, 0
        %v470 = vsel %vm375, %v278, 0
        %472 = vmatprep.subr.mxu0 0.0
        %473 = vmatpush1.xpose.msra.mxu0 %v425
        %474 = vmatprep.subr.mxu0 0.0
        %475 = vmatpush1.xpose.msra.mxu0 %v428
        %476 = vmatprep.subr.mxu0 0.0
        %477 = vmatpush1.xpose.msra.mxu0 %v431
        %478 = vmatprep.subr.mxu0 0.0
        %479 = vmatpush1.xpose.msra.mxu0 %v434
        %480 = vmatprep.subr.mxu0 0.0
        %481 = vmatpush1.xpose.msra.mxu0 %v437
        %482 = vmatprep.subr.mxu0 0.0
        %483 = vmatpush1.xpose.msra.mxu0 %v440
        %484 = vmatprep.subr.mxu0 0.0
        %485 = vmatpush1.xpose.msra.mxu0 %v443
        %486 = vmatprep.subr.mxu0 0.0
        %487 = vmatpush1.xpose.msra.mxu0 %v446
        %488 = vmatprep.subr.mxu0 0.0
        %489 = vmatpush1.xpose.msra.mxu0 %v449
        %490 = vmatprep.subr.mxu0 0.0
        %491 = vmatpush1.xpose.msra.mxu0 %v452
        %492 = vmatprep.subr.mxu0 0.0
        %493 = vmatpush1.xpose.msra.mxu0 %v455
        %494 = vmatprep.subr.mxu0 0.0
        %495 = vmatpush1.xpose.msra.mxu0 %v458
        %496 = vmatprep.subr.mxu0 0.0
        %497 = vmatpush1.xpose.msra.mxu0 %v461
        %498 = vmatprep.subr.mxu0 0.0
        %499 = vmatpush1.xpose.msra.mxu0 %v464
        %500 = vmatprep.subr.mxu0 0.0
        %501 = vmatpush1.xpose.msra.mxu0 %v467
        %502 = vmatprep.subr.mxu0 0.0
        %503 = vmatpush1.xpose.msra.mxu0 %v470
        %504 = vmatprep.subr.mxu0 0.0
        %505 = vmatpush1.xpose.msra.mxu0 0.0
        %506 = vmatprep.subr.mxu0 0.0
        %507 = vmatpush1.xpose.msra.mxu0 0.0
        %508 = vmatprep.subr.mxu0 0.0
        %509 = vmatpush1.xpose.msra.mxu0 0.0
        %510 = vmatprep.subr.mxu0 0.0
        %511 = vmatpush1.xpose.msra.mxu0 0.0
        %512 = vmatprep.subr.mxu0 0.0
        %513 = vmatpush1.xpose.msra.mxu0 0.0
        %514 = vmatprep.subr.mxu0 0.0
        %515 = vmatpush1.xpose.msra.mxu0 0.0
        %516 = vmatprep.subr.mxu0 0.0
        %517 = vmatpush1.xpose.msra.mxu0 0.0
        %518 = vmatprep.subr.mxu0 0.0
        %519 = vmatpush1.xpose.msra.mxu0 0.0
        %520 = vmatprep.subr.mxu0 0.0
        %521 = vmatpush1.xpose.msra.mxu0 0.0
        %522 = vmatprep.subr.mxu0 0.0
        %523 = vmatpush1.xpose.msra.mxu0 0.0
        %524 = vmatprep.subr.mxu0 0.0
        %525 = vmatpush1.xpose.msra.mxu0 0.0
        %526 = vmatprep.subr.mxu0 0.0
        %527 = vmatpush1.xpose.msra.mxu0 0.0
        %528 = vmatprep.subr.mxu0 0.0
        %529 = vmatpush1.xpose.msra.mxu0 0.0
        %530 = vmatprep.subr.mxu0 0.0
        %531 = vmatpush1.xpose.msra.mxu0 0.0
        %532 = vmatprep.subr.mxu0 0.0
        %533 = vmatpush1.xpose.msra.mxu0 0.0
        %534 = vmatprep.subr.mxu0 0.0
        %535 = vmatpush1.xpose.msra.mxu0 0.0
        %536 = vmatprep.mubr.f32.mxu0 0.0
        %537 = vmatmul.mubr.f32.gmra.mrb[0].mxu0 %v377
        %v538 = vpop.f32.mrb[0].mxu0
        %v539 = vadd.f32 %v298, %v538
        %v540 = vpop.f32.mrb[0].mxu0
        %541 = vmatprep.mubr.f32.mxu0 0.0
        %542 = vmatmul.mubr.f32.gmra.mrb[0].mxu0 %v380
        %v543 = vpop.f32.mrb[0].mxu0
        %v544 = vadd.f32 %v303, %v543
        %v545 = vpop.f32.mrb[0].mxu0
        %546 = vmatprep.mubr.f32.mxu0 0.0
        %547 = vmatmul.mubr.f32.gmra.mrb[0].mxu0 %v383
        %v548 = vpop.f32.mrb[0].mxu0
        %v549 = vadd.f32 %v308, %v548
        %v550 = vpop.f32.mrb[0].mxu0
        %551 = vmatprep.mubr.f32.mxu0 0.0
        %552 = vmatmul.mubr.f32.gmra.mrb[0].mxu0 %v386
        %v553 = vpop.f32.mrb[0].mxu0
        %v554 = vadd.f32 %v313, %v553
        %v555 = vpop.f32.mrb[0].mxu0
        %556 = vmatprep.mubr.f32.mxu0 0.0
        %557 = vmatmul.mubr.f32.gmra.mrb[0].mxu0 %v389
        %v558 = vpop.f32.mrb[0].mxu0
        %v559 = vadd.f32 %v318, %v558
        %v560 = vpop.f32.mrb[0].mxu0
        %561 = vmatprep.mubr.f32.mxu0 0.0
        %562 = vmatmul.mubr.f32.gmra.mrb[0].mxu0 %v392
        %v563 = vpop.f32.mrb[0].mxu0
        %v564 = vadd.f32 %v323, %v563
        %v565 = vpop.f32.mrb[0].mxu0
        %566 = vmatprep.mubr.f32.mxu0 0.0
        %567 = vmatmul.mubr.f32.gmra.mrb[0].mxu0 %v395
        %v568 = vpop.f32.mrb[0].mxu0
        %v569 = vadd.f32 %v328, %v568
        %v570 = vpop.f32.mrb[0].mxu0
        %571 = vmatprep.mubr.f32.mxu0 0.0
        %572 = vmatmul.mubr.f32.gmra.mrb[0].mxu0 %v398
        %v573 = vpop.f32.mrb[0].mxu0
        %v574 = vadd.f32 %v333, %v573
        %v575 = vpop.f32.mrb[0].mxu0
        %576 = vmatprep.mubr.f32.mxu0 0.0
        %577 = vmatmul.mubr.f32.gmra.mrb[0].mxu0 %v401
        %v578 = vpop.f32.mrb[0].mxu0
        %v579 = vadd.f32 %v338, %v578
        %v580 = vpop.f32.mrb[0].mxu0
        %581 = vmatprep.mubr.f32.mxu0 0.0
        %582 = vmatmul.mubr.f32.gmra.mrb[0].mxu0 %v404
        %v583 = vpop.f32.mrb[0].mxu0
        %v584 = vadd.f32 %v343, %v583
        %v585 = vpop.f32.mrb[0].mxu0
        %586 = vmatprep.mubr.f32.mxu0 0.0
        %587 = vmatmul.mubr.f32.gmra.mrb[0].mxu0 %v407
        %v588 = vpop.f32.mrb[0].mxu0
        %v589 = vadd.f32 %v348, %v588
        %v590 = vpop.f32.mrb[0].mxu0
        %591 = vmatprep.mubr.f32.mxu0 0.0
        %592 = vmatmul.mubr.f32.gmra.mrb[0].mxu0 %v410
        %v593 = vpop.f32.mrb[0].mxu0
        %v594 = vadd.f32 %v353, %v593
        %v595 = vpop.f32.mrb[0].mxu0
        %596 = vmatprep.mubr.f32.mxu0 0.0
        %597 = vmatmul.mubr.f32.gmra.mrb[0].mxu0 %v413
        %v598 = vpop.f32.mrb[0].mxu0
        %v599 = vadd.f32 %v358, %v598
        %v600 = vpop.f32.mrb[0].mxu0
        %601 = vmatprep.mubr.f32.mxu0 0.0
        %602 = vmatmul.mubr.f32.gmra.mrb[0].mxu0 %v416
        %v603 = vpop.f32.mrb[0].mxu0
        %v604 = vadd.f32 %v363, %v603
        %v605 = vpop.f32.mrb[0].mxu0
        %606 = vmatprep.mubr.f32.mxu0 0.0
        %607 = vmatmul.mubr.f32.gmra.mrb[0].mxu0 %v419
        %v608 = vpop.f32.mrb[0].mxu0
        %v609 = vadd.f32 %v368, %v608
        %v610 = vpop.f32.mrb[0].mxu0
        %611 = vmatprep.mubr.f32.mxu0 0.0
        %612 = vmatmul.mubr.f32.gmra.mrb[0].mxu0 %v422
        %v613 = vpop.f32.mrb[0].mxu0
        %v614 = vadd.f32 %v373, %v613
        %v615 = vpop.f32.mrb[0].mxu0
        %616 = vdwg.mxu0
        %v617 = vmax.f32 %v539, 0.0
        %v618 = vmax.f32 %v544, 0.0
        %v619 = vmax.f32 %v549, 0.0
        %v620 = vmax.f32 %v554, 0.0
        %v621 = vmax.f32 %v559, 0.0
        %v622 = vmax.f32 %v564, 0.0
        %v623 = vmax.f32 %v569, 0.0
        %v624 = vmax.f32 %v574, 0.0
        %v625 = vmax.f32 %v579, 0.0
        %v626 = vmax.f32 %v584, 0.0
        %v627 = vmax.f32 %v589, 0.0
        %v628 = vmax.f32 %v594, 0.0
        %v629 = vmax.f32 %v599, 0.0
        %v630 = vmax.f32 %v604, 0.0
        %v631 = vmax.f32 %v609, 0.0
        %v632 = vmax.f32 %v614, 0.0
        %v633 = vld [vmem:[%s3] sm:$0x1]
        %v634 = vld [vmem:[#allocation2] sm:$0x1]
        %636 = vset.pattern.permute.xlu0 0
        %637 = vperm.xlu0 %636, %v634
        %v638 = vpop.permute.xlu0 %637
        %v640 = vlaneseq
        %v641 = vshrl.u32 %v640, 7
        %v642 = vsub.s32 0, %v641
        %v643 = vrot.slane %v638, %v642
        %644 = vmatprep.subr.mxu0 0.0
        %645 = vmatpush1.msra.mxu0 %v617
        %646 = vmatprep.subr.mxu0 0.0
        %647 = vmatpush1.msra.mxu0 %v618
        %648 = vmatprep.subr.mxu0 0.0
        %649 = vmatpush1.msra.mxu0 %v619
        %650 = vmatprep.subr.mxu0 0.0
        %651 = vmatpush1.msra.mxu0 %v620
        %652 = vmatprep.subr.mxu0 0.0
        %653 = vmatpush1.msra.mxu0 %v621
        %654 = vmatprep.subr.mxu0 0.0
        %655 = vmatpush1.msra.mxu0 %v622
        %656 = vmatprep.subr.mxu0 0.0
        %657 = vmatpush1.msra.mxu0 %v623
        %658 = vmatprep.subr.mxu0 0.0
        %659 = vmatpush1.msra.mxu0 %v624
        %660 = vmatprep.subr.mxu0 0.0
        %661 = vmatpush1.msra.mxu0 %v625
        %662 = vmatprep.subr.mxu0 0.0
        %663 = vmatpush1.msra.mxu0 %v626
        %664 = vmatprep.subr.mxu0 0.0
        %665 = vmatpush1.msra.mxu0 %v627
        %666 = vmatprep.subr.mxu0 0.0
        %667 = vmatpush1.msra.mxu0 %v628
        %668 = vmatprep.subr.mxu0 0.0
        %669 = vmatpush1.msra.mxu0 %v629
        %670 = vmatprep.subr.mxu0 0.0
        %671 = vmatpush1.msra.mxu0 %v630
        %672 = vmatprep.subr.mxu0 0.0
        %673 = vmatpush1.msra.mxu0 %v631
        %674 = vmatprep.subr.mxu0 0.0
        %675 = vmatpush1.msra.mxu0 %v632
        %676 = vmatprep.subr.mxu0 0.0
        %677 = vmatpush1.msra.mxu0 0.0
        %678 = vmatprep.subr.mxu0 0.0
        %679 = vmatpush1.msra.mxu0 0.0
        %680 = vmatprep.subr.mxu0 0.0
        %681 = vmatpush1.msra.mxu0 0.0
        %682 = vmatprep.subr.mxu0 0.0
        %683 = vmatpush1.msra.mxu0 0.0
        %684 = vmatprep.subr.mxu0 0.0
        %685 = vmatpush1.msra.mxu0 0.0
        %686 = vmatprep.subr.mxu0 0.0
        %687 = vmatpush1.msra.mxu0 0.0
        %688 = vmatprep.subr.mxu0 0.0
        %689 = vmatpush1.msra.mxu0 0.0
        %690 = vmatprep.subr.mxu0 0.0
        %691 = vmatpush1.msra.mxu0 0.0
        %692 = vmatprep.subr.mxu0 0.0
        %693 = vmatpush1.msra.mxu0 0.0
        %694 = vmatprep.subr.mxu0 0.0
        %695 = vmatpush1.msra.mxu0 0.0
        %696 = vmatprep.subr.mxu0 0.0
        %697 = vmatpush1.msra.mxu0 0.0
        %698 = vmatprep.subr.mxu0 0.0
        %699 = vmatpush1.msra.mxu0 0.0
        %700 = vmatprep.subr.mxu0 0.0
        %701 = vmatpush1.msra.mxu0 0.0
        %702 = vmatprep.subr.mxu0 0.0
        %703 = vmatpush1.msra.mxu0 0.0
        %704 = vmatprep.subr.mxu0 0.0
        %705 = vmatpush1.msra.mxu0 0.0
        %706 = vmatprep.subr.mxu0 0.0
        %707 = vmatpush1.msra.mxu0 0.0
        %708 = vmatprep.mubr.f32.mxu0 0.0
        %709 = vmatmul.mubr.f32.gmra.mrb[0].mxu0 %v633
        %v710 = vpop.f32.mrb[0].mxu0
        %v711 = vadd.f32 %v643, %v710
        %v712 = vpop.f32.mrb[0].mxu0
        %713 = vdwg.mxu0
        %v714 = vxor.u32 %v711, 2147483648
        %v715 = vmul.f32 %v714, 1.442695
        %v716 = vpow.pop %v715
        %v717 = vadd.f32 %v716, 1.0
        %v718 = vrcp.pop %v717
        %v719 = vmul.f32 1.0, %v718
        %v720 = vsub.f32 0.0, %v711
        %v721 = vxor.u32 %v720, 2147483648
        %v722 = vmul.f32 %v721, 1.442695
        %v723 = vpow.pop %v722
        %v724 = vadd.f32 %v723, 1.0
        %v725 = vrcp.pop %v724
        %v726 = vmul.f32 1.0, %v725
        %v728 = vrot.slane %v726, 7
        %vm730 = vcmask 1040384
        %v731 = vsel %vm730, %v719, %v728
        %732 = vst [vmem:[%s232] sm:$0x3] %v731
        %s733 = sand.u32 %s139, 1
        %s734 = scalar_lea.sflag [#allocation4], %s733
        %s735 = sand.u32 %s139, 1
        %s736 = smul.addr %s735, 2
        %s737 = scalar_lea.vmem [#allocation3], %s736
        // Predicated region
        $region41: #{tpu_custom_call.1} parent=39 // pred_check
          %p738 = pneg %p149
        $region42: #{tpu_custom_call.1} parent=39 // pred_check_branch
          %740 = sbr.rel (%p738) target = $region44
        $region43: #{tpu_custom_call.1} parent=39 // pred_region
          %s742 = ssub.s32 32, 32
          %743 = vsyncadd %s734, %s742
          %s744 = smul.addr %s21, 32
          %s745 = scalar_lea.hbm %s5, %s744
          %s747 = sshll.u32 %s737, 4
          %s748 = int_to_ptr.vmem [resolvable:$true] %s747
          %750 = dma.vmem_to_hbm [thread:$0]  %s748, 32, %s745, %s734
        $region44: #{tpu_custom_call.1} parent=39 // pred_fallthru
          _
      $region40: #{tpu_custom_call.1} parent=5 // pred_fallthru
        _
      %p751 = scmp.le.s32.totalorder 2, %s16
      // Predicated region
      $region45: #{tpu_custom_call.1} parent=5 // pred_check
        %p752 = pneg %p751
      $region46: #{tpu_custom_call.1} parent=5 // pred_check_branch
        %754 = sbr.rel (%p752) target = $region48
      $region47: #{tpu_custom_call.1} parent=5 // pred_region
        %s755 = ssub.s32 %s16, 2
        // Predicated region
        $region49: #{tpu_custom_call.1} parent=47 // pred_check
          %p756 = pneg %p155
        $region50: #{tpu_custom_call.1} parent=47 // pred_check_branch
          %758 = sbr.rel (%p756) target = $region52
        $region51: #{tpu_custom_call.1} parent=47 // pred_region
          %s759 = sand.u32 %s140, 1
          %s760 = scalar_lea.sflag [#allocation4], %s759
          %s761 = sand.u32 %s140, 1
          %s762 = smul.addr %s761, 2
          %s763 = scalar_lea.vmem [#allocation3], %s762
          %764 = dma.done %s760, 32
        $region52: #{tpu_custom_call.1} parent=47 // pred_fallthru
          _
      $region48: #{tpu_custom_call.1} parent=5 // pred_fallthru
        _
    $region6: #{tpu_custom_call.1} parent=1 // loop_footer
      %s20 = sadd.s32 1, %s16
    $region7: #{tpu_custom_call.1} parent=1 // loop_footer_branch
      %15 = sbr.rel target = $region3
    $region8: #{tpu_custom_call.1} parent=1 // loop_exit
      _
    %765 = vsyncpa [#allocation4], 1
    %s766 = scalar_lea.sflag [#allocation4], 1
    %767 = vsyncpa %s766, 1

</llo_original>
